<compile_context>
chip_gen: v6e
topology: v6e:2x2x1
jax: 0.10.0
libtpu: 0.0.40
codegen_flags: <defaults>
</compile_context>

<pallas_src>
import functools

import jax
import jax.numpy as jnp
from jax.experimental import pallas as pl
from jax.experimental.pallas import tpu as pltpu


_LANE = 128
# Budget for the double-buffered in+out x blocks (4 * C * TILE_HW * itemsize).
# Conservative enough for v7x's 64 MiB physical / 32 MiB scoped VMEM.
_VMEM_BLOCK_BUDGET = 20 * 1024 * 1024
_VMEM_LIMIT_BYTES = 32 * 1024 * 1024   # safe on v5e / v6e / v7x


def _choose_tile_hw(hw: int, c: int, itemsize: int) -> int:
    """Largest lane-dense (multiple of 128) spatial tile that divides HW and
    keeps the double-buffered in+out blocks under the VMEM budget."""
    if hw % _LANE != 0:
        # Ragged HW (e.g. 14*14=196): keep the full extent (full-extent dims are
        # exempt from the (8,128) rule) instead of emitting masked partial stores.
        return hw
    max_tile = _VMEM_BLOCK_BUDGET // (4 * c * itemsize)
    max_tile = max(_LANE, (max_tile // _LANE) * _LANE)
    tile = min(hw, max_tile)
    while tile > _LANE and hw % tile != 0:
        tile -= _LANE
    return tile


def _sse_kernel(x_ref, w_ref, b_ref, o_ref):
    # x_ref: (1, C, T) in x dtype   w_ref: (1, C) f32
    # b_ref: (1,) f32 in SMEM       o_ref: (1, C, T) in x dtype
    x = x_ref[0]                                   # (C, T)
    w = w_ref[...].astype(x.dtype)                 # (1, C)
    # 1x1 conv over channels == (1,C) @ (C,T), accumulated in f32 on the MXU.
    logits = jnp.dot(w, x, preferred_element_type=jnp.float32) + b_ref[0]
    squeeze = jax.nn.sigmoid(logits)               # (1, T) f32
    # Multiply in x's dtype: no full-tile f32 materialization for bf16 inputs;
    # for f32 inputs this is bit-identical to the previous version.
    o_ref[0] = x * squeeze.astype(x.dtype)


@jax.jit
def spatial_se_layer(x, conv_weight, conv_bias, weights=None):
    """
    x           : (B, C, H, W)   NCHW, same as the PyTorch module (f32 or bf16)
    conv_weight : (1, C, 1, 1)   nn.Conv2d(C, 1, 1).weight
    conv_bias   : (1,)           nn.Conv2d(C, 1, 1).bias
    weights     : optional (N, C) few-shot weights; if given, mean over dim 0
                  is the 1x1 conv kernel with no bias (matches F.conv2d path).
    """
    B, C, H, W = x.shape
    HW = H * W

    if weights is not None:
        w_row = jnp.mean(weights, axis=0).reshape(1, C).astype(jnp.float32)
        bias = jnp.zeros((1,), jnp.float32)
    else:
        w_row = conv_weight.reshape(1, C).astype(jnp.float32)
        bias = conv_bias.reshape(1).astype(jnp.float32)

    tile_hw = _choose_tile_hw(HW, C, x.dtype.itemsize)
    n_tiles = HW // tile_hw

    x_flat = x.reshape(B, C, HW)

    out = pl.pallas_call(
        _sse_kernel,
        out_shape=jax.ShapeDtypeStruct((B, C, HW), x.dtype),
        grid_spec=pltpu.PrefetchScalarGridSpec(
            num_scalar_prefetch=0,
            grid=(B, n_tiles),
            in_specs=[
                # x tile: one batch, all channels, one lane-dense spatial slab.
                pl.BlockSpec((1, C, tile_hw), lambda b, s: (b, 0, s)),
                # conv weight row: constant across the grid (no re-DMA).
                pl.BlockSpec((1, C), lambda b, s: (0, 0)),
                # bias: scalar path -> SMEM, no VMEM DMA descriptor.
                pl.BlockSpec(memory_space=pltpu.MemorySpace.SMEM),
            ],
            out_specs=pl.BlockSpec((1, C, tile_hw), lambda b, s: (b, 0, s)),
        ),
        compiler_params=pltpu.CompilerParams(
            dimension_semantics=("parallel", "parallel"),
            vmem_limit_bytes=_VMEM_LIMIT_BYTES,
        ),
    )(x_flat, w_row, bias)

    return out.reshape(B, C, H, W)


def _reference(x, conv_weight, conv_bias):
    # Pure-JAX reference of the PyTorch forward (no-weights path).
    w = conv_weight.reshape(-1)                              # (C,)
    logits = jnp.einsum("bchw,c->bhw", x, w) + conv_bias[0]  # (B, H, W)
    sq = jax.nn.sigmoid(logits)[:, None, :, :]               # (B, 1, H, W)
    return x * sq


if __name__ == "__main__":
    B, C, H, W = 2, 4, 16, 16

    key = jax.random.PRNGKey(0)
    kx, kw, kb, kfs = jax.random.split(key, 4)

    x = jax.random.normal(kx, (B, C, H, W), dtype=jnp.float32)
    # Deterministic synthetic Conv2d(C, 1, 1) parameters.
    conv_weight = jax.random.normal(kw, (1, C, 1, 1), dtype=jnp.float32) * 0.1
    conv_bias = jax.random.normal(kb, (1,), dtype=jnp.float32) * 0.1

    # Default path (module's own conv).
    y = spatial_se_layer(x, conv_weight, conv_bias)
    y = jax.block_until_ready(y)
    y_ref = _reference(x, conv_weight, conv_bias)
    assert y.shape == (B, C, H, W)
    assert jnp.allclose(y, y_ref, atol=1e-5, rtol=1e-5), "mismatch vs reference"

    # Few-shot weights path (F.conv2d with mean weights, no bias).
    fs_w = jax.random.normal(kfs, (3, C), dtype=jnp.float32) * 0.1
    y_fs = spatial_se_layer(x, conv_weight, conv_bias, weights=fs_w)
    y_fs = jax.block_until_ready(y_fs)
    y_fs_ref = _reference(
        x, jnp.mean(fs_w, axis=0).reshape(1, C, 1, 1), jnp.zeros((1,), jnp.float32)
    )
    assert jnp.allclose(y_fs, y_fs_ref, atol=1e-5, rtol=1e-5), "few-shot mismatch"

    print("KERNEL_OK")
</pallas_src>

<mosaic_0001>
module attributes {stable_mosaic.version = 11 : i64} {
  func.func @_sse_kernel(%arg0: i32, %arg1: i32, %arg2: memref<1x4x256xf32, #tpu.memory_space<vmem>>, %arg3: memref<1x4xf32, #tpu.memory_space<vmem>>, %arg4: memref<1xf32, #tpu.memory_space<smem>>, %arg5: memref<1x4x256xf32, #tpu.memory_space<vmem>>) attributes {dimension_semantics = [#tpu.dimension_semantics<parallel>, #tpu.dimension_semantics<parallel>], iteration_bounds = array<i64: 2, 1>, scalar_prefetch = 0 : i64, scratch_operands = 0 : i64, tpu.core_type = #tpu.core_type<tc>, window_params = [{transform_indices = @transform_0, window_bounds = array<i64: 1, 4, 256>}, {pipeline_mode = #tpu.pipeline_mode<synchronous>, transform_indices = @transform_1, window_bounds = array<i64: 1, 4>}, {transform_indices = @transform_2, window_bounds = array<i64: 1>}, {transform_indices = @transform_3, window_bounds = array<i64: 1, 4, 256>}]} {
    %c0 = arith.constant 0 : index
    %c0_0 = arith.constant 0 : index
    %c0_1 = arith.constant 0 : index
    %0 = vector.load %arg2[%c0, %c0_0, %c0_1] : memref<1x4x256xf32, #tpu.memory_space<vmem>>, vector<1x4x256xf32>
    %1 = vector.shape_cast %0 : vector<1x4x256xf32> to vector<4x256xf32>
    %c0_2 = arith.constant 0 : index
    %c0_3 = arith.constant 0 : index
    %2 = vector.load %arg3[%c0_2, %c0_3] : memref<1x4xf32, #tpu.memory_space<vmem>>, vector<1x4xf32>
    %cst = arith.constant dense<0.000000e+00> : vector<1x256xf32>
    %3 = tpu.matmul %2, %1, %cst {dimension_numbers = #tpu.dot_dimension_numbers<[1], [0], [0], [1], [0, 0, 1, 1], [], []>} : vector<1x4xf32>, vector<4x256xf32>, vector<1x256xf32> -> vector<1x256xf32>
    %c0_4 = arith.constant 0 : index
    %4 = memref.load %arg4[%c0_4] : memref<1xf32, #tpu.memory_space<smem>>
    %5 = vector.broadcast %4 : f32 to vector<1x256xf32>
    %6 = arith.addf %3, %5 : vector<1x256xf32>
    %7 = arith.negf %6 : vector<1x256xf32>
    %8 = math.exp %7 : vector<1x256xf32>
    %cst_5 = arith.constant 1.000000e+00 : f32
    %9 = vector.broadcast %cst_5 : f32 to vector<1x256xf32>
    %10 = arith.addf %9, %8 : vector<1x256xf32>
    %11 = arith.divf %9, %10 : vector<1x256xf32>
    %12 = vector.broadcast %11 : vector<1x256xf32> to vector<4x256xf32>
    %13 = arith.mulf %1, %12 : vector<4x256xf32>
    %c0_6 = arith.constant 0 : index
    %c0_7 = arith.constant 0 : index
    %c0_8 = arith.constant 0 : index
    %14 = vector.load %arg5[%c0_6, %c0_7, %c0_8] : memref<1x4x256xf32, #tpu.memory_space<vmem>>, vector<1x4x256xf32>
    %15 = vector.shape_cast %14 : vector<1x4x256xf32> to vector<4x256xf32>
    %16 = vector.shape_cast %13 : vector<4x256xf32> to vector<1x4x256xf32>
    tpu.vector_store %arg5[%c0_6, %c0_7, %c0_8], %16 {strides = array<i32>} : memref<1x4x256xf32, #tpu.memory_space<vmem>>, vector<1x4x256xf32>,
    return
  }
  func.func @transform_0(%arg0: i32, %arg1: i32) -> (i32, i32, i32) {
    %c0_i32 = arith.constant 0 : i32
    %c0_i32_0 = arith.constant 0 : i32
    return %arg0, %c0_i32, %arg1 : i32, i32, i32
  }
  func.func @transform_1(%arg0: i32, %arg1: i32) -> (i32, i32) {
    %c0_i32 = arith.constant 0 : i32
    %c0_i32_0 = arith.constant 0 : i32
    %c0_i32_1 = arith.constant 0 : i32
    return %c0_i32, %c0_i32_0 : i32, i32
  }
  func.func @transform_2(%arg0: i32, %arg1: i32) -> i32 {
    %c0_i32 = arith.constant 0 : i32
    %c0_i32_0 = arith.constant 0 : i32
    return %c0_i32 : i32
  }
  func.func @transform_3(%arg0: i32, %arg1: i32) -> (i32, i32, i32) {
    %c0_i32 = arith.constant 0 : i32
    %c0_i32_0 = arith.constant 0 : i32
    return %arg0, %c0_i32, %arg1 : i32, i32, i32
  }
}

</mosaic_0001>

<llo_original>
// kernel: spatial_se_layer.1
$region0: #{spatial_se_layer.1}
  #allocation0 [shape = 'u32[]', space=smem, size = 0x4, offset = 0x4, fixed_abs, tag = 'smem constant byte address 0x4 - core index']
  #allocation1 [shape = 'u32[144,128]{1,0:T(1,128)}', space=vmem, size = 0x12000, scoped, tag = 'internal scratch']
  #allocation2 [shape = 'f32[1]{0:T(128)S(6)}', space=smem, size = 0x200, scoped, tag = 'scoped memory for spatial_se_layer.1']
  %s0 = inlined_call_operand.vmem [shape: f32[2,4,256], index: 0, kind: input, shape index: {}]
  %s1 = inlined_call_operand.vmem [shape: f32[1,4], index: 1, kind: input, shape index: {}]
  %s2 = inlined_call_operand.<no memory space> [shape: f32[1], index: 2, kind: input, shape index: {}]
  %s3 = inlined_call_operand.vmem [shape: f32[2,4,256], index: 3, kind: output, shape index: {}]
  %s4 = sld [smem:[#allocation0]]
  $region45: #{spatial_se_layer.1} parent=0
    _
  %s6 = ssub.s32 1, %s4
  %s7 = scalar_select 0, %s6, %s4
  %8 = sst [smem:[#allocation2]] %s2
  loop: start=0, step=1, limit=4
  $region2: #{spatial_se_layer.1} parent=0 // loop_pre_header
    _
  $region3: #{spatial_se_layer.1} parent=0 // loop_header
    %s10 = sphi 0, %s14
    %p11 = scmp.ge.s32.totalorder %s10, 4
    %s17 = sphi 0, %s29
    %s18 = sphi 0, %s25
    %s19 = sphi 0, %s17
    %s20 = sphi 0, %s18
    %s21 = sphi 0, %s19
    %s22 = sphi 0, %s20
    %s34 = sphi 0, %s36
    %s37 = sphi 0, %s34
    %s38 = sphi 0, %s37
    %s54 = sphi 0, %s38
    %s58 = sphi 0, %s58
    %s60 = sphi 0, %s58
    %s61 = sphi 0, %s60
    %s75 = sphi 0, %s61
    %s79 = sphi 0, %s79
    %s81 = sphi 0, %s79
    %s82 = sphi 0, %s81
    %s96 = sphi 0, %s82
    %s104 = sphi 0, %s106
    %s107 = sphi 0, %s104
    %s108 = sphi 0, %s107
    %s124 = sphi 0, %s108
  $region4: #{spatial_se_layer.1} parent=0 // loop_header_branch
    %13 = sbr.rel (%p11) target = $region8
  $region5: #{spatial_se_layer.1} parent=0 // loop_body
    %s15 = ssub.s32 %s10, 1
    %s16 = ssub.s32 %s10, 2
    %s23 = sadd.s32 1, %s18
    %p24 = scmp.ge.s32.totalorder %s23, 1
    %s25 = scalar_select %p24, 0, %s23
    %s26 = sadd.s32 1, %s17
    %s27 = scalar_select %p24, %s26, %s17
    %p28 = scmp.ge.s32.totalorder %s27, 2
    %s29 = scalar_select %p28, 0, %s27
    %s30 = ssub.s32 %s17, %s29
    %s31 = ssub.s32 %s18, %s25
    %s32 = sor.u32 %s30, %s31
    %p33 = scmp.eq.s32.totalorder %s32, 0
    %s35 = sadd.s32 %s34, 1
    %s36 = scalar_select %p33, %s34, %s35
    %p39 = pneg %p33
    %p40 = scmp.eq.s32.totalorder %s10, 1
    %p41 = por %p39, %p40
    %p42 = scmp.ne.s32.totalorder %s34, %s37
    %p43 = scmp.eq.s32.totalorder %s10, 0
    %p44 = por %p42, %p43
    %p45 = scmp.ne.s32.totalorder %s34, %s37
    %p46 = scmp.eq.s32.totalorder %s15, 1
    %p47 = por %p45, %p46
    %p48 = scmp.ne.s32.totalorder %s37, %s38
    %p49 = scmp.eq.s32.totalorder %s15, 0
    %p50 = por %p48, %p49
    %p51 = scmp.ne.s32.totalorder %s37, %s38
    %p52 = scmp.eq.s32.totalorder %s16, 1
    %p53 = por %p51, %p52
    %p55 = scmp.ne.s32.totalorder %s38, %s54
    %p56 = scmp.eq.s32.totalorder %s16, 0
    %p57 = por %p55, %p56
    %s59 = sadd.s32 %s58, 1
    %p62 = scmp.eq.s32.totalorder %s10, 1
    %p63 = scmp.ne.s32.totalorder %s58, %s60
    %p64 = scmp.eq.s32.totalorder %s10, 0
    %p65 = por %p63, %p64
    %p66 = scmp.ne.s32.totalorder %s58, %s60
    %p67 = scmp.eq.s32.totalorder %s15, 1
    %p68 = por %p66, %p67
    %p69 = scmp.ne.s32.totalorder %s60, %s61
    %p70 = scmp.eq.s32.totalorder %s15, 0
    %p71 = por %p69, %p70
    %p72 = scmp.ne.s32.totalorder %s60, %s61
    %p73 = scmp.eq.s32.totalorder %s16, 1
    %p74 = por %p72, %p73
    %p76 = scmp.ne.s32.totalorder %s61, %s75
    %p77 = scmp.eq.s32.totalorder %s16, 0
    %p78 = por %p76, %p77
    %s80 = sadd.s32 %s79, 1
    %p83 = scmp.eq.s32.totalorder %s10, 1
    %p84 = scmp.ne.s32.totalorder %s79, %s81
    %p85 = scmp.eq.s32.totalorder %s10, 0
    %p86 = por %p84, %p85
    %p87 = scmp.ne.s32.totalorder %s79, %s81
    %p88 = scmp.eq.s32.totalorder %s15, 1
    %p89 = por %p87, %p88
    %p90 = scmp.ne.s32.totalorder %s81, %s82
    %p91 = scmp.eq.s32.totalorder %s15, 0
    %p92 = por %p90, %p91
    %p93 = scmp.ne.s32.totalorder %s81, %s82
    %p94 = scmp.eq.s32.totalorder %s16, 1
    %p95 = por %p93, %p94
    %p97 = scmp.ne.s32.totalorder %s82, %s96
    %p98 = scmp.eq.s32.totalorder %s16, 0
    %p99 = por %p97, %p98
    %s100 = ssub.s32 %s17, %s29
    %s101 = ssub.s32 %s18, %s25
    %s102 = sor.u32 %s100, %s101
    %p103 = scmp.eq.s32.totalorder %s102, 0
    %s105 = sadd.s32 %s104, 1
    %s106 = scalar_select %p103, %s104, %s105
    %p109 = pneg %p103
    %p110 = scmp.eq.s32.totalorder %s10, 1
    %p111 = por %p109, %p110
    %p112 = scmp.ne.s32.totalorder %s104, %s107
    %p113 = scmp.eq.s32.totalorder %s10, 0
    %p114 = por %p112, %p113
    %p115 = scmp.ne.s32.totalorder %s104, %s107
    %p116 = scmp.eq.s32.totalorder %s15, 1
    %p117 = por %p115, %p116
    %p118 = scmp.ne.s32.totalorder %s107, %s108
    %p119 = scmp.eq.s32.totalorder %s15, 0
    %p120 = por %p118, %p119
    %p121 = scmp.ne.s32.totalorder %s107, %s108
    %p122 = scmp.eq.s32.totalorder %s16, 1
    %p123 = por %p121, %p122
    %p125 = scmp.ne.s32.totalorder %s108, %s124
    %p126 = scmp.eq.s32.totalorder %s16, 0
    %p127 = por %p125, %p126
    %p128 = scmp.le.s32.totalorder 1, %s10
    %p129 = scmp.lt.s32.totalorder %s10, 3
    %p130 = pnand %p128, %p129
    %p131 = pneg %p130
    // Predicated region
    $region9: #{spatial_se_layer.1} parent=5 // pred_check
      _
    $region10: #{spatial_se_layer.1} parent=5 // pred_check_branch
      %133 = sbr.rel (%p130) target = $region12
    $region11: #{spatial_se_layer.1} parent=5 // pred_region
      %s134 = ssub.s32 %s10, 1
      // Predicated region
      $region13: #{spatial_se_layer.1} parent=11 // pred_check
        %p135 = pneg %p71
      $region14: #{spatial_se_layer.1} parent=11 // pred_check_branch
        %137 = sbr.rel (%p135) target = $region16
      $region15: #{spatial_se_layer.1} parent=11 // pred_region
        _
      $region16: #{spatial_se_layer.1} parent=11 // pred_fallthru
        _
      // Predicated region
      $region17: #{spatial_se_layer.1} parent=11 // pred_check
        %p138 = pneg %p92
      $region18: #{spatial_se_layer.1} parent=11 // pred_check_branch
        %140 = sbr.rel (%p138) target = $region20
      $region19: #{spatial_se_layer.1} parent=11 // pred_region
        _
      $region20: #{spatial_se_layer.1} parent=11 // pred_fallthru
        _
    $region12: #{spatial_se_layer.1} parent=5 // pred_fallthru
      _
    %p141 = scmp.lt.s32.totalorder %s10, 2
    // Predicated region
    $region21: #{spatial_se_layer.1} parent=5 // pred_check
      %p142 = pneg %p141
    $region22: #{spatial_se_layer.1} parent=5 // pred_check_branch
      %144 = sbr.rel (%p142) target = $region24
    $region23: #{spatial_se_layer.1} parent=5 // pred_region
      // Predicated region
      $region25: #{spatial_se_layer.1} parent=23 // pred_check
        %p145 = pneg %p44
      $region26: #{spatial_se_layer.1} parent=23 // pred_check_branch
        %147 = sbr.rel (%p145) target = $region28
      $region27: #{spatial_se_layer.1} parent=23 // pred_region
        %s148 = smul.u32 2, %s18
        %p149 = scmp.lt.s32.totalorder %s17, 1
        %s150 = scalar_select %p149, %s17, 1
        %p151 = scmp.lt.s32.totalorder %s148, 1
        %s152 = scalar_select %p151, %s148, 1
        %s153 = smul.addr %s150, 2
        %s154 = sadd.s32 %s152, %s153
        %s155 = smul.addr %s154, 4
        %s156 = scalar_lea.vmem %s0, %s155
        %s157 = smul.u32 2, %s18
      $region28: #{spatial_se_layer.1} parent=23 // pred_fallthru
        _
    $region24: #{spatial_se_layer.1} parent=5 // pred_fallthru
      _
    %p158 = scmp.le.s32.totalorder 1, %s10
    %p159 = scmp.lt.s32.totalorder %s10, 3
    %p160 = pnand %p158, %p159
    %p161 = pneg %p160
    // Predicated region
    $region29: #{spatial_se_layer.1} parent=5 // pred_check
      _
    $region30: #{spatial_se_layer.1} parent=5 // pred_check_branch
      %163 = sbr.rel (%p160) target = $region32
    $region31: #{spatial_se_layer.1} parent=5 // pred_region
      %s164 = ssub.s32 %s10, 1
      %s165 = smul.u32 2, %s20
      %p166 = scmp.lt.s32.totalorder %s19, 1
      %s167 = scalar_select %p166, %s19, 1
      %p168 = scmp.lt.s32.totalorder %s165, 1
      %s169 = scalar_select %p168, %s165, 1
      %s170 = smul.addr %s167, 2
      %s171 = sadd.s32 %s169, %s170
      %s172 = smul.addr %s171, 4
      %s173 = scalar_lea.vmem %s0, %s172
      %p174 = pneg %p50
      %p175 = pneg %p47
      %p176 = pneg %p71
      %p177 = pneg %p68
      %p178 = pneg %p92
      %p179 = pneg %p89
      %p180 = pneg %p120
      %p181 = pneg %p117
      %s182 = smul.u32 2, %s20
      %p183 = scmp.lt.s32.totalorder %s19, 1
      %s184 = scalar_select %p183, %s19, 1
      %p185 = scmp.lt.s32.totalorder %s182, 1
      %s186 = scalar_select %p185, %s182, 1
      %s187 = smul.addr %s184, 2
      %s188 = sadd.s32 %s186, %s187
      %s189 = smul.addr %s188, 4
      %s190 = scalar_lea.vmem %s3, %s189
      %s191 = smul.u32 2, %s20
      %p192 = scmp.lt.s32.totalorder %s19, 1
      %s193 = scalar_select %p192, %s19, 1
      %p194 = scmp.lt.s32.totalorder %s191, 1
      %s195 = scalar_select %p194, %s191, 1
      %s196 = smul.addr %s193, 2
      %s197 = sadd.s32 %s195, %s196
      %s198 = smul.addr %s197, 4
      %s199 = scalar_lea.vmem %s0, %s198
      %s200 = smul.u32 2, %s20
      %s201 = smul.u32 2, %s20
      %p202 = scmp.lt.s32.totalorder %s19, 1
      %s203 = scalar_select %p202, %s19, 1
      %p204 = scmp.lt.s32.totalorder %s201, 1
      %s205 = scalar_select %p204, %s201, 1
      %s206 = smul.addr %s203, 2
      %s207 = sadd.s32 %s205, %s206
      %s208 = smul.addr %s207, 4
      %s209 = scalar_lea.vmem %s3, %s208
      %s210 = smul.u32 2, %s20
      %v211 = vld [vmem:[%s199] sm:$0xff]
      %v212 = vld [vmem:[%s1] sm:$0x1]
      %s213 = sld [smem:[#allocation2]]
      %v214 = vstv %s213
      %v216 = vcombine.high %v211, %v211
      %vm217 = vcmask 31744
      %v219 = vsel %vm217, %v212, 0
      %vm221 = vcmask 1043456
      %v222 = vsel %vm221, %v211, 0
      %v224 = vsel %vm221, %v216, 0
      %226 = vmatprep.subr.mxu0 0.0
      %227 = vmatpush1.msra.mxu0 0.0
      %228 = vmatprep.subr.mxu0 0.0
      %229 = vmatpush1.msra.mxu0 0.0
      %230 = vmatprep.subr.mxu0 0.0
      %231 = vmatpush1.msra.mxu0 0.0
      %232 = vmatprep.subr.mxu0 0.0
      %233 = vmatpush1.msra.mxu0 0.0
      %234 = vmatprep.subr.mxu0 0.0
      %235 = vmatpush1.msra.mxu0 0.0
      %236 = vmatprep.subr.mxu0 0.0
      %237 = vmatpush1.msra.mxu0 0.0
      %238 = vmatprep.subr.mxu0 0.0
      %239 = vmatpush1.msra.mxu0 0.0
      %240 = vmatprep.subr.mxu0 0.0
      %241 = vmatpush1.msra.mxu0 0.0
      %242 = vmatprep.subr.mxu0 0.0
      %243 = vmatpush1.msra.mxu0 0.0
      %244 = vmatprep.subr.mxu0 0.0
      %245 = vmatpush1.msra.mxu0 0.0
      %246 = vmatprep.subr.mxu0 0.0
      %247 = vmatpush1.msra.mxu0 0.0
      %248 = vmatprep.subr.mxu0 0.0
      %249 = vmatpush1.msra.mxu0 0.0
      %250 = vmatprep.subr.mxu0 0.0
      %251 = vmatpush1.msra.mxu0 0.0
      %252 = vmatprep.subr.mxu0 0.0
      %253 = vmatpush1.msra.mxu0 0.0
      %254 = vmatprep.subr.mxu0 0.0
      %255 = vmatpush1.msra.mxu0 0.0
      %256 = vmatprep.subr.mxu0 %v224
      %257 = vmatpush1.msra.mxu0 %v222
      %258 = vmatprep.subr.mxu0 0.0
      %259 = vmatpush2.msra.mxu0 0.0
      %260 = vmatprep.subr.mxu0 0.0
      %261 = vmatpush2.msra.mxu0 0.0
      %262 = vmatprep.subr.mxu0 0.0
      %263 = vmatpush2.msra.mxu0 0.0
      %264 = vmatprep.subr.mxu0 0.0
      %265 = vmatpush2.msra.mxu0 0.0
      %266 = vmatprep.subr.mxu0 0.0
      %267 = vmatpush2.msra.mxu0 0.0
      %268 = vmatprep.subr.mxu0 0.0
      %269 = vmatpush2.msra.mxu0 0.0
      %270 = vmatprep.subr.mxu0 0.0
      %271 = vmatpush2.msra.mxu0 0.0
      %272 = vmatprep.subr.mxu0 0.0
      %273 = vmatpush2.msra.mxu0 0.0
      %274 = vmatprep.subr.mxu0 0.0
      %275 = vmatpush2.msra.mxu0 0.0
      %276 = vmatprep.subr.mxu0 0.0
      %277 = vmatpush2.msra.mxu0 0.0
      %278 = vmatprep.subr.mxu0 0.0
      %279 = vmatpush2.msra.mxu0 0.0
      %280 = vmatprep.subr.mxu0 0.0
      %281 = vmatpush2.msra.mxu0 0.0
      %282 = vmatprep.subr.mxu0 0.0
      %283 = vmatpush2.msra.mxu0 0.0
      %284 = vmatprep.subr.mxu0 0.0
      %285 = vmatpush2.msra.mxu0 0.0
      %286 = vmatprep.subr.mxu0 0.0
      %287 = vmatpush2.msra.mxu0 0.0
      %288 = vmatprep.subr.mxu0 0.0
      %289 = vmatpush2.msra.mxu0 0.0
      %290 = vmatprep.mubr.f32.mxu0 0.0
      %291 = vmatmul.mubr.f32.gmra.mxu0 %v219
      %v292 = vpop.f32.mrf.mxu0
      %v293 = vadd.f32 %v214, %v292
      %v294 = vpop.f32.mrf.mxu0
      %v295 = vadd.f32 %v214, %v294
      %296 = vdwg.mxu0
      %v297 = vxor.u32 %v293, 2147483648
      %v298 = vxor.u32 %v295, 2147483648
      %v299 = vmul.f32 %v297, 1.442695
      %v300 = vpow.pop %v299
      %v301 = vmul.f32 %v298, 1.442695
      %v302 = vpow.pop %v301
      %v303 = vadd.f32 %v300, 1.0
      %v304 = vadd.f32 %v302, 1.0
      %v305 = vrcp.pop %v303
      %v306 = vmul.f32 1.0, %v305
      %v307 = vrcp.pop %v304
      %v308 = vmul.f32 1.0, %v307
      %v309 = vlaneseq
      %v310 = vshrl.u32 %v309, 7
      %v311 = vsub.s32 0, %v310
      %v312 = vrot.slane %v306, %v311
      %v313 = vlaneseq
      %v314 = vshrl.u32 %v313, 7
      %v315 = vsub.s32 0, %v314
      %v316 = vrot.slane %v308, %v315
      %v319 = vcombine.low %v312, %v316
      %v321 = vmul.f32 %v211, %v319
      %322 = vst [vmem:[%s209] sm:$0xff] %v321
      %s323 = smul.u32 2, %s20
      %p324 = scmp.lt.s32.totalorder %s19, 1
      %s325 = scalar_select %p324, %s19, 1
      %p326 = scmp.lt.s32.totalorder %s323, 1
      %s327 = scalar_select %p326, %s323, 1
      %s328 = smul.addr %s325, 2
      %s329 = sadd.s32 %s327, %s328
      %s330 = smul.addr %s329, 4
      %s331 = scalar_lea.vmem %s3, %s330
      // Predicated region
      $region33: #{spatial_se_layer.1} parent=31 // pred_check
        %p332 = pneg %p117
      $region34: #{spatial_se_layer.1} parent=31 // pred_check_branch
        %334 = sbr.rel (%p332) target = $region36
      $region35: #{spatial_se_layer.1} parent=31 // pred_region
        %s335 = smul.u32 2, %s20
      $region36: #{spatial_se_layer.1} parent=31 // pred_fallthru
        _
    $region32: #{spatial_se_layer.1} parent=5 // pred_fallthru
      _
    %p336 = scmp.le.s32.totalorder 2, %s10
    // Predicated region
    $region37: #{spatial_se_layer.1} parent=5 // pred_check
      %p337 = pneg %p336
    $region38: #{spatial_se_layer.1} parent=5 // pred_check_branch
      %339 = sbr.rel (%p337) target = $region40
    $region39: #{spatial_se_layer.1} parent=5 // pred_region
      %s340 = ssub.s32 %s10, 2
      // Predicated region
      $region41: #{spatial_se_layer.1} parent=39 // pred_check
        %p341 = pneg %p123
      $region42: #{spatial_se_layer.1} parent=39 // pred_check_branch
        %343 = sbr.rel (%p341) target = $region44
      $region43: #{spatial_se_layer.1} parent=39 // pred_region
        %s344 = smul.u32 2, %s22
        %p345 = scmp.lt.s32.totalorder %s21, 1
        %s346 = scalar_select %p345, %s21, 1
        %p347 = scmp.lt.s32.totalorder %s344, 1
        %s348 = scalar_select %p347, %s344, 1
        %s349 = smul.addr %s346, 2
        %s350 = sadd.s32 %s348, %s349
        %s351 = smul.addr %s350, 4
        %s352 = scalar_lea.vmem %s3, %s351
      $region44: #{spatial_se_layer.1} parent=39 // pred_fallthru
        _
    $region40: #{spatial_se_layer.1} parent=5 // pred_fallthru
      _
  $region6: #{spatial_se_layer.1} parent=0 // loop_footer
    %s14 = sadd.s32 1, %s10
  $region7: #{spatial_se_layer.1} parent=0 // loop_footer_branch
    %9 = sbr.rel target = $region3
  $region8: #{spatial_se_layer.1} parent=0 // loop_exit
    _

</llo_original>
